<compile_context>
chip_gen: v5e
topology: v5e:2x2
jax: 0.10.0
libtpu: 0.0.40
codegen_flags: <defaults>
</compile_context>

<pallas_src>
import math

import jax
import jax.numpy as jnp
from jax.experimental import pallas as pl
from jax.experimental.pallas import tpu as pltpu


def _round_up(x, m):
    return (x + m - 1) // m * m


# ----------------------------------------------------------------------------
# Kernel: one (tm, tn) output tile; grid axis 2 iterates over K (reduction).
# ----------------------------------------------------------------------------
def _linear_kernel(x_ref, w_ref, b_ref, o_ref, acc_ref):
    k = pl.program_id(2)

    @pl.when(k == 0)
    def _():
        acc_ref[...] = jnp.zeros_like(acc_ref)

    x = x_ref[...]
    w = w_ref[...]
    # Cast activations to the (possibly bf16) weight dtype in-register; accumulate f32.
    acc_ref[...] += jnp.dot(x.astype(w.dtype), w, preferred_element_type=jnp.float32)

    @pl.when(k == pl.num_programs(2) - 1)
    def _():
        o_ref[...] = (acc_ref[...] + b_ref[...].astype(jnp.float32)).astype(o_ref.dtype)


# ----------------------------------------------------------------------------
# Wrapper: tiled, pipelined y = x @ weight_t + bias
# ----------------------------------------------------------------------------
def pallas_linear(x, weight_t, bias, *, tm=512, tn=512, tk=512):
    """x: (M, K); weight_t: (K, N) (pre-transposed once); bias: (N,). Returns (M, N)."""
    M, K = x.shape
    K2, N = weight_t.shape
    assert K == K2, (K, K2)
    out_dtype = x.dtype

    # Shrink tiles to the array extent for small problems (block == full dim is legal).
    tm = min(tm, M)
    tn = min(tn, N)
    tk = min(tk, K)

    # Zero-pad so every tile divides its dimension (zero K-padding contributes 0).
    Mp, Np, Kp = _round_up(M, tm), _round_up(N, tn), _round_up(K, tk)
    if (Mp, Kp) != (M, K):
        x = jnp.pad(x, ((0, Mp - M), (0, Kp - K)))
    if (Kp, Np) != (K, N):
        weight_t = jnp.pad(weight_t, ((0, Kp - K), (0, Np - N)))
    b2 = bias.reshape(1, N)
    if Np != N:
        b2 = jnp.pad(b2, ((0, 0), (0, Np - N)))

    grid = (Mp // tm, Np // tn, Kp // tk)

    y = pl.pallas_call(
        _linear_kernel,
        out_shape=jax.ShapeDtypeStruct((Mp, Np), out_dtype),
        grid_spec=pltpu.PrefetchScalarGridSpec(
            num_scalar_prefetch=0,
            grid=grid,
            in_specs=[
                pl.BlockSpec((tm, tk), lambda i, j, k: (i, k)),
                pl.BlockSpec((tk, tn), lambda i, j, k: (k, j)),
                pl.BlockSpec((1, tn), lambda i, j, k: (0, j)),
            ],
            out_specs=pl.BlockSpec((tm, tn), lambda i, j, k: (i, j)),
            scratch_shapes=[pltpu.VMEM((tm, tn), jnp.float32)],
        ),
        compiler_params=pltpu.CompilerParams(
            dimension_semantics=("parallel", "parallel", "arbitrary")
        ),
    )(x, weight_t, b2)

    if (Mp, Np) != (M, N):
        y = y[:M, :N]
    return y


# ----------------------------------------------------------------------------
# Module: JAX/Pallas equivalent of onmt XavierLinear
# ----------------------------------------------------------------------------
class XavierLinearPallas:
    def __init__(self, d_in, d_out, bias=True, rng_key=None, param_dtype=jnp.float32):
        # TODO(synk): weight_norm branch (onmt.Constants.weight_norm=True) not implemented;
        #             this mirrors the default (plain nn.Linear) path.
        if rng_key is None:
            rng_key = jax.random.PRNGKey(0)
        bound = math.sqrt(6.0 / (d_in + d_out))  # xavier_uniform_, gain=1
        w = jax.random.uniform(rng_key, (d_out, d_in), jnp.float32, -bound, bound)
        # Pre-transpose ONCE so no per-call weight.T HBM pass (review feedback).
        self.weight_t = jnp.asarray(w.T, dtype=param_dtype)  # (d_in, d_out)
        # Reference zero-inits bias; passing zeros when bias=False is numerically identical.
        self.bias = jnp.zeros((d_out,), jnp.float32)
        self.has_bias = bias
        self.d_in, self.d_out = d_in, d_out

    def __call__(self, x):
        # nn.Linear applies to the last dim; flatten leading dims (Bottle-style).
        lead = x.shape[:-1]
        x2 = x.reshape((-1, self.d_in))
        y = pallas_linear(x2, self.weight_t, self.bias)
        return y.reshape(lead + (self.d_out,))


# ----------------------------------------------------------------------------
if __name__ == "__main__":
    root = jax.random.PRNGKey(0)
    kx, kw, kx2, kw2 = jax.random.split(root, 4)

    # Small shapes consistent with Transformer usage: (seq=8, batch=2, d_model=32).
    seq, batch, d_in, d_out = 8, 2, 32, 32
    x = jax.random.normal(kx, (seq, batch, d_in), jnp.float32)
    layer = XavierLinearPallas(d_in, d_out, bias=True, rng_key=kw)

    y = jax.block_until_ready(layer(x))
    ref = (
        jnp.dot(x.reshape(-1, d_in), layer.weight_t,
                precision=jax.lax.Precision.HIGHEST)
        + layer.bias
    ).reshape(seq, batch, d_out)

    assert y.shape == (seq, batch, d_out)
    assert bool(jnp.all(jnp.isfinite(y)))
    assert bool(jnp.allclose(y, ref, atol=1e-2, rtol=1e-2))

    # Second case exercising a real multi-block (M, N, K) grid with K-accumulation.
    M, K, N = 384, 256, 256
    xb = jax.random.normal(kx2, (M, K), jnp.float32)
    layer2 = XavierLinearPallas(K, N, bias=True, rng_key=kw2)
    yb = jax.block_until_ready(
        pallas_linear(xb, layer2.weight_t, layer2.bias, tm=128, tn=128, tk=128)
    )
    refb = (
        jnp.dot(xb, layer2.weight_t, precision=jax.lax.Precision.HIGHEST) + layer2.bias
    )
    assert bool(jnp.allclose(yb, refb, atol=1e-2, rtol=1e-2))

    print("KERNEL_OK")
</pallas_src>

<mosaic_0001>
module attributes {stable_mosaic.version = 11 : i64} {
  func.func @_linear_kernel(%arg0: i32, %arg1: i32, %arg2: i32, %arg3: memref<16x32xf32, #tpu.memory_space<vmem>>, %arg4: memref<32x32xf32, #tpu.memory_space<vmem>>, %arg5: memref<1x32xf32, #tpu.memory_space<vmem>>, %arg6: memref<16x32xf32, #tpu.memory_space<vmem>>, %arg7: memref<16x32xf32, #tpu.memory_space<vmem>>) attributes {dimension_semantics = [#tpu.dimension_semantics<parallel>, #tpu.dimension_semantics<parallel>, #tpu.dimension_semantics<arbitrary>], iteration_bounds = array<i64: 1, 1, 1>, scalar_prefetch = 0 : i64, scratch_operands = 1 : i64, tpu.core_type = #tpu.core_type<tc>, window_params = [{transform_indices = @transform_0, window_bounds = array<i64: 16, 32>}, {transform_indices = @transform_1, window_bounds = array<i64: 32, 32>}, {transform_indices = @transform_2, window_bounds = array<i64: 1, 32>}, {transform_indices = @transform_3, window_bounds = array<i64: 16, 32>}]} {
    %c0_i32 = arith.constant 0 : i32
    %0 = arith.cmpi eq, %arg2, %c0_i32 : i32
    %1 = arith.extui %0 : i1 to i32
    %c0_i32_0 = arith.constant 0 : i32
    %2 = arith.cmpi ne, %1, %c0_i32_0 : i32
    scf.if %2 {
      %cst_10 = arith.constant 0.000000e+00 : f32
      %12 = vector.broadcast %cst_10 : f32 to vector<16x32xf32>
      %c0_11 = arith.constant 0 : index
      %c0_12 = arith.constant 0 : index
      %13 = vector.load %arg7[%c0_11, %c0_12] : memref<16x32xf32, #tpu.memory_space<vmem>>, vector<16x32xf32>
      tpu.vector_store %arg7[%c0_11, %c0_12], %12 {strides = array<i32>} : memref<16x32xf32, #tpu.memory_space<vmem>>, vector<16x32xf32>,
    } else {
    }
    %c0 = arith.constant 0 : index
    %c0_1 = arith.constant 0 : index
    %3 = vector.load %arg3[%c0, %c0_1] : memref<16x32xf32, #tpu.memory_space<vmem>>, vector<16x32xf32>
    %c0_2 = arith.constant 0 : index
    %c0_3 = arith.constant 0 : index
    %4 = vector.load %arg4[%c0_2, %c0_3] : memref<32x32xf32, #tpu.memory_space<vmem>>, vector<32x32xf32>
    %c0_4 = arith.constant 0 : index
    %c0_5 = arith.constant 0 : index
    %5 = vector.load %arg7[%c0_4, %c0_5] : memref<16x32xf32, #tpu.memory_space<vmem>>, vector<16x32xf32>
    %cst = arith.constant dense<0.000000e+00> : vector<16x32xf32>
    %6 = tpu.matmul %3, %4, %cst {dimension_numbers = #tpu.dot_dimension_numbers<[1], [0], [0], [1], [0, 0, 1, 1], [], []>} : vector<16x32xf32>, vector<32x32xf32>, vector<16x32xf32> -> vector<16x32xf32>
    %7 = arith.addf %5, %6 : vector<16x32xf32>
    %c0_6 = arith.constant 0 : index
    %c0_7 = arith.constant 0 : index
    %8 = vector.load %arg7[%c0_6, %c0_7] : memref<16x32xf32, #tpu.memory_space<vmem>>, vector<16x32xf32>
    tpu.vector_store %arg7[%c0_6, %c0_7], %7 {strides = array<i32>} : memref<16x32xf32, #tpu.memory_space<vmem>>, vector<16x32xf32>,
    %c0_i32_8 = arith.constant 0 : i32
    %9 = arith.cmpi eq, %arg2, %c0_i32_8 : i32
    %10 = arith.extui %9 : i1 to i32
    %c0_i32_9 = arith.constant 0 : i32
    %11 = arith.cmpi ne, %10, %c0_i32_9 : i32
    scf.if %11 {
      %c0_10 = arith.constant 0 : index
      %c0_11 = arith.constant 0 : index
      %12 = vector.load %arg7[%c0_10, %c0_11] : memref<16x32xf32, #tpu.memory_space<vmem>>, vector<16x32xf32>
      %c0_12 = arith.constant 0 : index
      %c0_13 = arith.constant 0 : index
      %13 = vector.load %arg5[%c0_12, %c0_13] : memref<1x32xf32, #tpu.memory_space<vmem>>, vector<1x32xf32>
      %14 = vector.broadcast %13 : vector<1x32xf32> to vector<16x32xf32>
      %15 = arith.addf %12, %14 : vector<16x32xf32>
      %c0_14 = arith.constant 0 : index
      %c0_15 = arith.constant 0 : index
      %16 = vector.load %arg6[%c0_14, %c0_15] : memref<16x32xf32, #tpu.memory_space<vmem>>, vector<16x32xf32>
      tpu.vector_store %arg6[%c0_14, %c0_15], %15 {strides = array<i32>} : memref<16x32xf32, #tpu.memory_space<vmem>>, vector<16x32xf32>,
    } else {
    }
    return
  }
  func.func @transform_0(%arg0: i32, %arg1: i32, %arg2: i32) -> (i32, i32) {
    %c0_i32 = arith.constant 0 : i32
    return %arg0, %arg2 : i32, i32
  }
  func.func @transform_1(%arg0: i32, %arg1: i32, %arg2: i32) -> (i32, i32) {
    %c0_i32 = arith.constant 0 : i32
    return %arg2, %arg1 : i32, i32
  }
  func.func @transform_2(%arg0: i32, %arg1: i32, %arg2: i32) -> (i32, i32) {
    %c0_i32 = arith.constant 0 : i32
    %c0_i32_0 = arith.constant 0 : i32
    return %c0_i32, %arg1 : i32, i32
  }
  func.func @transform_3(%arg0: i32, %arg1: i32, %arg2: i32) -> (i32, i32) {
    %c0_i32 = arith.constant 0 : i32
    return %arg0, %arg1 : i32, i32
  }
}

</mosaic_0001>

<llo_original>
// kernel: tpu_custom_call.1
$region0: #{tpu_custom_call.1}
  #allocation0 [shape = 'u32[]', space=smem, size = 0x4, offset = 0x4, fixed_abs, tag = 'smem constant byte address 0x4 - core index']
  #allocation1 [shape = 'u32[72,128]{1,0:T(1,128)}', space=vmem, size = 0x9000, scoped, tag = 'internal scratch']
  #allocation2 [shape = 'f32[16,32]{1,0:T(8,128)}', space=vmem, size = 0x2000, scoped, tag = 'scratch operand']
  %s0 = inlined_call_operand.hbm [shape: f32[16,32], index: 0, kind: input, shape index: {}]
  %s1 = inlined_call_operand.hbm [shape: f32[32,32], index: 1, kind: input, shape index: {}]
  %s2 = inlined_call_operand.vmem [shape: f32[1,32], index: 2, kind: input, shape index: {}]
  %s3 = inlined_call_operand.hbm [shape: f32[16,32], index: 3, kind: output, shape index: {}]
  %s4 = sld [smem:[#allocation0]]
  $region38: #{tpu_custom_call.1} parent=0
    _
  %s6 = ssub.s32 1, %s4
  %s7 = scalar_select 0, %s6, %s4
  $region1: #{tpu_custom_call.1} parent=0
    #allocation3 [shape = 'u8[8192]{0}', space=vmem, size = 0x2000, scoped, tag = 'input window, operand 0, single buffered']
    #allocation4 [shape = 's32[1]{0}', space=sflag, size = 0x4, scoped, tag = 'scoped memory for tpu_custom_call.1']
    #allocation5 [shape = 's32[1]{0}', space=sflag, size = 0x4, scoped, tag = 'scoped memory for tpu_custom_call.1']
    #allocation6 [shape = 'u8[16384]{0}', space=vmem, size = 0x4000, scoped, tag = 'input window, operand 1, single buffered']
    #allocation7 [shape = 's32[1]{0}', space=sflag, size = 0x4, scoped, tag = 'scoped memory for tpu_custom_call.1']
    #allocation8 [shape = 'u8[8192]{0}', space=vmem, size = 0x2000, scoped, tag = 'output window, operand 0, single buffered']
    %8 = vsyncpa [#allocation4], 0
    %9 = vsyncpa [#allocation7], 0
    %10 = vsyncpa [#allocation5], 0
    // Predicated region
    $region2: #{tpu_custom_call.1} parent=1 // pred_check
      _
    $region3: #{tpu_custom_call.1} parent=1 // pred_check_branch
      %12 = sbr.rel (0) target = $region5
    $region4: #{tpu_custom_call.1} parent=1 // pred_region
      %14 = vsyncadd [#allocation4], 0
      %s15 = sshll.u32 %s0, 4
      %s16 = int_to_ptr.hbm [resolvable:$true] %s15
      %s17 = sshll.u32 [#allocation3], 4
      %s18 = int_to_ptr.vmem [resolvable:$true] %s17
      %23 = dma.hbm_to_vmem [thread:$0]  %s16, 256, %s18, [#allocation4], 128, 128, 8
    $region5: #{tpu_custom_call.1} parent=1 // pred_fallthru
      _
    // Predicated region
    $region6: #{tpu_custom_call.1} parent=1 // pred_check
      _
    $region7: #{tpu_custom_call.1} parent=1 // pred_check_branch
      %25 = sbr.rel (0) target = $region9
    $region8: #{tpu_custom_call.1} parent=1 // pred_region
      %27 = vsyncadd [#allocation7], 0
      %s28 = sshll.u32 %s1, 4
      %s29 = int_to_ptr.hbm [resolvable:$true] %s28
      %s30 = sshll.u32 [#allocation6], 4
      %s31 = int_to_ptr.vmem [resolvable:$true] %s30
      %36 = dma.hbm_to_vmem [thread:$0]  %s29, 512, %s31, [#allocation7], 128, 128, 8
    $region9: #{tpu_custom_call.1} parent=1 // pred_fallthru
      _
    // Predicated region
    $region10: #{tpu_custom_call.1} parent=1 // pred_check
      _
    $region11: #{tpu_custom_call.1} parent=1 // pred_check_branch
      %38 = sbr.rel (0) target = $region13
    $region12: #{tpu_custom_call.1} parent=1 // pred_region
      _
    $region13: #{tpu_custom_call.1} parent=1 // pred_fallthru
      _
    // Predicated region
    $region14: #{tpu_custom_call.1} parent=1 // pred_check
      _
    $region15: #{tpu_custom_call.1} parent=1 // pred_check_branch
      %40 = sbr.rel (0) target = $region17
    $region16: #{tpu_custom_call.1} parent=1 // pred_region
      %42 = dma.done [#allocation4], 256
    $region17: #{tpu_custom_call.1} parent=1 // pred_fallthru
      _
    // Predicated region
    $region18: #{tpu_custom_call.1} parent=1 // pred_check
      _
    $region19: #{tpu_custom_call.1} parent=1 // pred_check_branch
      %44 = sbr.rel (0) target = $region21
    $region20: #{tpu_custom_call.1} parent=1 // pred_region
      %46 = dma.done [#allocation7], 512
    $region21: #{tpu_custom_call.1} parent=1 // pred_fallthru
      _
    %p47 = scmp.eq.s32.totalorder 0, 0
    // Predicated region
    $region22: #{tpu_custom_call.1} parent=1 // pred_check
      %p48 = pneg %p47
    $region23: #{tpu_custom_call.1} parent=1 // pred_check_branch
      %50 = sbr.rel (%p48) target = $region25
    $region24: #{tpu_custom_call.1} parent=1 // pred_region
      %vm51 = vcmask 261120
      %52 = vst.msk [vmem:[#allocation2] sm:$0xff] %vm51, 0.0
      %53 = vst.msk [vmem:[#allocation2 + $0x8] sm:$0xff] %vm51, 0.0
    $region25: #{tpu_custom_call.1} parent=1 // pred_fallthru
      _
    %v54 = vld [vmem:[#allocation3] sm:$0xff]
    %v55 = vld [vmem:[#allocation3 + $0x8] sm:$0xff]
    %v56 = vld [vmem:[#allocation6] sm:$0xff]
    %v57 = vld [vmem:[#allocation6 + $0x8] sm:$0xff]
    %v58 = vld [vmem:[#allocation6 + $0x10] sm:$0xff]
    %v59 = vld [vmem:[#allocation6 + $0x18] sm:$0xff]
    %v60 = vld [vmem:[#allocation2] sm:$0xff]
    %v61 = vld [vmem:[#allocation2 + $0x8] sm:$0xff]
    %vm62 = vcmask 261120
    %v64 = vsel %vm62, %v54, 0
    %v67 = vsel %vm62, %v55, 0
    %69 = vmatpush.msra.mxu0 0.0
    %70 = vmatpush.msra.mxu0 0.0
    %71 = vmatpush.msra.mxu0 0.0
    %72 = vmatpush.msra.mxu0 0.0
    %73 = vmatpush.msra.mxu0 0.0
    %74 = vmatpush.msra.mxu0 0.0
    %75 = vmatpush.msra.mxu0 0.0
    %76 = vmatpush.msra.mxu0 0.0
    %77 = vmatpush.msra.mxu0 0.0
    %78 = vmatpush.msra.mxu0 0.0
    %79 = vmatpush.msra.mxu0 0.0
    %80 = vmatpush.msra.mxu0 0.0
    %81 = vmatpush.msra.mxu0 %v59
    %82 = vmatpush.msra.mxu0 %v58
    %83 = vmatpush.msra.mxu0 %v57
    %84 = vmatpush.msra.mxu0 %v56
    %85 = vmatmul.f32.gmra.mxu0 %v64
    %v86 = vpop.f32.mrf.mxu0
    %v87 = vadd.f32 0.0, %v86
    %88 = vmatmul.f32.gmra.mxu0 %v67
    %v89 = vpop.f32.mrf.mxu0
    %v90 = vadd.f32 0.0, %v89
    %91 = vdwg.mxu0
    %v92 = vadd.f32 %v60, %v87
    %v93 = vadd.f32 %v61, %v90
    %94 = vst.msk [vmem:[#allocation2] sm:$0xff] %vm62, %v92
    %95 = vst.msk [vmem:[#allocation2 + $0x8] sm:$0xff] %vm62, %v93
    // Predicated region
    $region26: #{tpu_custom_call.1} parent=1 // pred_check
      %p96 = pneg %p47
    $region27: #{tpu_custom_call.1} parent=1 // pred_check_branch
      %98 = sbr.rel (%p96) target = $region29
    $region28: #{tpu_custom_call.1} parent=1 // pred_region
      %v99 = vld [vmem:[#allocation2] sm:$0xff]
      %v100 = vld [vmem:[#allocation2 + $0x8] sm:$0xff]
      %v101 = vld [vmem:[%s2] sm:$0x1]
      %v103 = vperm.slane %v101, 0
      %v105 = vadd.f32 %v99, %v103
      %v106 = vadd.f32 %v100, %v103
      %107 = vst.msk [vmem:[#allocation8] sm:$0xff] %vm62, %v105
      %108 = vst.msk [vmem:[#allocation8 + $0x8] sm:$0xff] %vm62, %v106
    $region29: #{tpu_custom_call.1} parent=1 // pred_fallthru
      _
    // Predicated region
    $region30: #{tpu_custom_call.1} parent=1 // pred_check
      _
    $region31: #{tpu_custom_call.1} parent=1 // pred_check_branch
      %110 = sbr.rel (0) target = $region33
    $region32: #{tpu_custom_call.1} parent=1 // pred_region
      %112 = vsyncadd [#allocation5], 0
      %s113 = sshll.u32 [#allocation8], 4
      %s114 = int_to_ptr.vmem [resolvable:$true] %s113
      %s115 = sshll.u32 %s3, 4
      %s116 = int_to_ptr.hbm [resolvable:$true] %s115
      %121 = dma.vmem_to_hbm [thread:$0]  %s114, 256, %s116, [#allocation5], 128, 128, 8
    $region33: #{tpu_custom_call.1} parent=1 // pred_fallthru
      _
    // Predicated region
    $region34: #{tpu_custom_call.1} parent=1 // pred_check
      _
    $region35: #{tpu_custom_call.1} parent=1 // pred_check_branch
      %123 = sbr.rel (0) target = $region37
    $region36: #{tpu_custom_call.1} parent=1 // pred_region
      %125 = dma.done [#allocation5], 256
    $region37: #{tpu_custom_call.1} parent=1 // pred_fallthru
      _
    %126 = vsyncpa [#allocation4], 1
    %127 = vsyncpa [#allocation7], 1
    %128 = vsyncpa [#allocation5], 1

</llo_original>
